<compile_context>
chip_gen: v5e
topology: v5e:2x2
jax: 0.10.0
libtpu: 0.0.40
codegen_flags: <defaults>
</compile_context>

<pallas_src>
import functools

import jax
import jax.numpy as jnp
from jax.experimental import pallas as pl
from jax.experimental.pallas import tpu as pltpu

_SUBLANE = 8
_LANE = 128


def _round_up(x: int, m: int) -> int:
    return ((x + m - 1) // m) * m


def _vmem_capacity_bytes() -> int:
    """Physical VMEM per TensorCore; conservative 64 MiB fallback (v7x)."""
    cap = 64 * 1024 * 1024
    try:
        info = pltpu.get_tpu_info()
        cap = int(getattr(info, "vmem_capacity_bytes", cap))
    except Exception:
        pass
    return max(cap, 64 * 1024 * 1024)


def _choose_tiles(rows: int, hw: int, bytes_pair: int, budget: int):
    """Pick (block_rows, block_hw) so 2 inputs x 2 pipeline buffers fit `budget`."""
    per = 2 * bytes_pair                      # double-buffered bytes per (x, t) element pair
    rows8 = _round_up(rows, _SUBLANE)

    # 1) rows per block if each block spans the full hw extent.
    tm = (budget // max(hw * per, 1)) // _SUBLANE * _SUBLANE
    tm = min(tm, rows8, 4096)

    if tm >= min(rows8, 512):
        chw = hw
    else:
        # 2) hw too large for full-row blocks: chunk the reduction axis
        #    (multiple of 128 lanes) and keep a healthy row tile.
        tm = min(rows8, 512)
        chw = (budget // max(tm * per, 1)) // _LANE * _LANE
        chw = max(_LANE, min(chw, _round_up(hw, _LANE)))

    # 3) prefer >=2 row tiles (v7x megacore) while each tile still moves >=2 MiB.
    if tm >= rows8 and rows >= 2 * _SUBLANE:
        half = _round_up(rows8 // 2, _SUBLANE)
        if half * chw * bytes_pair >= 2 * 1024 * 1024:
            tm = half

    return min(tm, rows), min(chw, hw)


def _dice_kernel(x_ref, t_ref, o_ref, num_acc, den_acc, *,
                 smooth: float, hw: int, chw: int, mask_tail: bool):
    # x_ref, t_ref: (TM, CHW) tiles; o_ref: (TM, 128) lane-dense per-row loss.
    k = pl.program_id(1)

    @pl.when(k == 0)
    def _init():
        num_acc[...] = jnp.zeros_like(num_acc)
        den_acc[...] = jnp.zeros_like(den_acc)

    x = jax.nn.sigmoid(x_ref[...].astype(jnp.float32))
    t = t_ref[...].astype(jnp.float32)

    if mask_tail:
        # The last hw chunk is padded by Pallas with unspecified data; mask it
        # out (sigmoid(pad) != 0 would otherwise corrupt the sums).
        col = jax.lax.broadcasted_iota(jnp.int32, x.shape, 1) + k * chw
        valid = col < hw
        x = jnp.where(valid, x, 0.0)
        t = jnp.where(valid, t, 0.0)

    num_acc[...] += jnp.sum(x * t, axis=-1, keepdims=True)
    # Fused denominator reduce: one XLU cross-lane reduce instead of two.
    den_acc[...] += jnp.sum(x + t, axis=-1, keepdims=True)

    @pl.when(k == pl.num_programs(1) - 1)
    def _finalize():
        dice = (2.0 * num_acc[...] + smooth) / (den_acc[...] + smooth)
        loss = 1.0 - dice                                    # (TM, 1)
        # Lane-dense store: broadcast the per-row loss across the 128 lanes so
        # the store is a full unmasked vst; the wrapper reads lane 0.
        o_ref[...] = jnp.broadcast_to(loss, o_ref.shape).astype(o_ref.dtype)


def dice_loss(inputs: jax.Array, targets: jax.Array, smooth: float = 1e-7,
              *, block_rows: int | None = None, block_hw: int | None = None) -> jax.Array:
    """Pallas equivalent of DiceLoss.forward.

    inputs, targets: [B, N, H, W]  ->  per-instance loss [B, N] (float32).
    block_rows / block_hw are optional overrides for testing.
    """
    assert inputs.shape == targets.shape
    B, N, H, W = inputs.shape
    rows, hw = B * N, H * W

    x2 = inputs.reshape(rows, hw)
    t2 = targets.reshape(rows, hw)
    bytes_pair = x2.dtype.itemsize + t2.dtype.itemsize

    cap = _vmem_capacity_bytes()
    # Budget for the double-buffered input streams (roughly half of physical
    # VMEM, capped at 48 MiB): ~24 MiB on v7x, 48 MiB on v5e/v6e.
    budget = max(8 * 1024 * 1024, min(cap // 2 - 8 * 1024 * 1024, 48 * 1024 * 1024))

    tm, chw = _choose_tiles(rows, hw, bytes_pair, budget)
    if block_rows is not None:
        tm = int(block_rows)
    if block_hw is not None:
        chw = int(block_hw)
    assert tm == rows or tm % _SUBLANE == 0, "block_rows must be a multiple of 8 or == rows"
    assert chw == hw or chw % _LANE == 0, "block_hw must be a multiple of 128 or == hw"

    n_row_tiles = pl.cdiv(rows, tm)
    n_hw_chunks = pl.cdiv(hw, chw)
    mask_tail = (hw % chw) != 0

    kernel = functools.partial(_dice_kernel, smooth=float(smooth),
                               hw=hw, chw=chw, mask_tail=mask_tail)

    # Actual VMEM footprint (inputs double-buffered + output + scratch) plus slack.
    need = (2 * tm * chw * bytes_pair          # 2 pipeline buffers x (x + t)
            + 2 * tm * _LANE * 4               # output double buffer
            + 2 * tm * _LANE * 4               # scratch (lane-padded, conservative)
            + 2 * 1024 * 1024)
    vmem_limit = int(min(max(int(need * 1.25), 32 * 1024 * 1024), cap - 8 * 1024 * 1024))

    out = pl.pallas_call(
        kernel,
        out_shape=jax.ShapeDtypeStruct((n_row_tiles * tm, _LANE), jnp.float32),
        grid_spec=pltpu.PrefetchScalarGridSpec(
            num_scalar_prefetch=0,
            grid=(n_row_tiles, n_hw_chunks),
            in_specs=[
                pl.BlockSpec((tm, chw), lambda i, k: (i, k)),
                pl.BlockSpec((tm, chw), lambda i, k: (i, k)),
            ],
            out_specs=pl.BlockSpec((tm, _LANE), lambda i, k: (i, 0)),
            scratch_shapes=[
                pltpu.VMEM((tm, 1), jnp.float32),   # sum(x * t)
                pltpu.VMEM((tm, 1), jnp.float32),   # sum(x + t)
            ],
        ),
        compiler_params=pltpu.CompilerParams(
            dimension_semantics=("parallel", "arbitrary"),
            vmem_limit_bytes=vmem_limit,
        ),
    )(x2, t2)

    return out[:rows, 0].reshape(B, N)


def _reference(inputs, targets, smooth=1e-7):
    x = jax.nn.sigmoid(inputs.astype(jnp.float32)).reshape(*inputs.shape[:2], -1)
    t = targets.astype(jnp.float32).reshape(*targets.shape[:2], -1)
    num = 2.0 * jnp.sum(x * t, axis=-1)
    den = jnp.sum(x, axis=-1) + jnp.sum(t, axis=-1)
    return 1.0 - (num + smooth) / (den + smooth)


if __name__ == "__main__":
    key = jax.random.PRNGKey(0)
    k1, k2, k3, k4 = jax.random.split(key, 4)

    # Case 1: module-style small shapes, f32, auto-chosen tiles.
    B, N, H, W = 2, 4, 16, 16
    inputs = jax.random.normal(k1, (B, N, H, W), dtype=jnp.float32)
    targets = (jax.random.uniform(k2, (B, N, H, W)) > 0.5).astype(jnp.float32)

    loss = dice_loss(inputs, targets)
    jax.block_until_ready(loss)
    ref = _reference(inputs, targets)
    assert loss.shape == (B, N)
    assert jnp.allclose(loss, ref, atol=1e-5, rtol=1e-5), (loss, ref)

    # Case 2: bf16 inputs, ragged shapes, forced hw-chunking — exercises the
    # chunked accumulation, tail-chunk masking, and partial row-tile paths.
    B2, N2, H2, W2 = 3, 8, 9, 15
    inputs2 = jax.random.normal(k3, (B2, N2, H2, W2), dtype=jnp.float32).astype(jnp.bfloat16)
    targets2 = (jax.random.uniform(k4, (B2, N2, H2, W2)) > 0.5).astype(jnp.bfloat16)

    loss2 = dice_loss(inputs2, targets2, block_rows=16, block_hw=128)
    jax.block_until_ready(loss2)
    ref2 = _reference(inputs2, targets2)
    assert loss2.shape == (B2, N2)
    assert jnp.allclose(loss2, ref2, atol=1e-5, rtol=1e-5), (loss2, ref2)

    print("KERNEL_OK")
</pallas_src>

<mosaic_0001>
module attributes {stable_mosaic.version = 11 : i64} {
  func.func @_dice_kernel(%arg0: i32, %arg1: i32, %arg2: memref<8x256xf32, #tpu.memory_space<vmem>>, %arg3: memref<8x256xf32, #tpu.memory_space<vmem>>, %arg4: memref<8x128xf32, #tpu.memory_space<vmem>>, %arg5: memref<8x1xf32, #tpu.memory_space<vmem>>, %arg6: memref<8x1xf32, #tpu.memory_space<vmem>>) attributes {dimension_semantics = [#tpu.dimension_semantics<parallel>, #tpu.dimension_semantics<arbitrary>], iteration_bounds = array<i64: 1, 1>, scalar_prefetch = 0 : i64, scratch_operands = 2 : i64, tpu.core_type = #tpu.core_type<tc>, window_params = [{transform_indices = @transform_0, window_bounds = array<i64: 8, 256>}, {transform_indices = @transform_1, window_bounds = array<i64: 8, 256>}, {transform_indices = @transform_2, window_bounds = array<i64: 8, 128>}]} {
    %c0_i32 = arith.constant 0 : i32
    %0 = arith.cmpi eq, %arg1, %c0_i32 : i32
    %1 = arith.extui %0 : i1 to i32
    %c0_i32_0 = arith.constant 0 : i32
    %2 = arith.cmpi ne, %1, %c0_i32_0 : i32
    scf.if %2 {
      %cst_16 = arith.constant 0.000000e+00 : f32
      %25 = vector.broadcast %cst_16 : f32 to vector<8x1xf32>
      %c0_17 = arith.constant 0 : index
      %c0_18 = arith.constant 0 : index
      %26 = vector.load %arg5[%c0_17, %c0_18] : memref<8x1xf32, #tpu.memory_space<vmem>>, vector<8x1xf32>
      tpu.vector_store %arg5[%c0_17, %c0_18], %25 {strides = array<i32>} : memref<8x1xf32, #tpu.memory_space<vmem>>, vector<8x1xf32>,
      %cst_19 = arith.constant 0.000000e+00 : f32
      %27 = vector.broadcast %cst_19 : f32 to vector<8x1xf32>
      %c0_20 = arith.constant 0 : index
      %c0_21 = arith.constant 0 : index
      %28 = vector.load %arg6[%c0_20, %c0_21] : memref<8x1xf32, #tpu.memory_space<vmem>>, vector<8x1xf32>
      tpu.vector_store %arg6[%c0_20, %c0_21], %27 {strides = array<i32>} : memref<8x1xf32, #tpu.memory_space<vmem>>, vector<8x1xf32>,
    } else {
    }
    %c0 = arith.constant 0 : index
    %c0_1 = arith.constant 0 : index
    %3 = vector.load %arg2[%c0, %c0_1] : memref<8x256xf32, #tpu.memory_space<vmem>>, vector<8x256xf32>
    %4 = arith.negf %3 : vector<8x256xf32>
    %5 = math.exp %4 : vector<8x256xf32>
    %cst = arith.constant 1.000000e+00 : f32
    %6 = vector.broadcast %cst : f32 to vector<8x256xf32>
    %7 = arith.addf %6, %5 : vector<8x256xf32>
    %8 = arith.divf %6, %7 : vector<8x256xf32>
    %c0_2 = arith.constant 0 : index
    %c0_3 = arith.constant 0 : index
    %9 = vector.load %arg3[%c0_2, %c0_3] : memref<8x256xf32, #tpu.memory_space<vmem>>, vector<8x256xf32>
    %c0_4 = arith.constant 0 : index
    %c0_5 = arith.constant 0 : index
    %10 = vector.load %arg5[%c0_4, %c0_5] : memref<8x1xf32, #tpu.memory_space<vmem>>, vector<8x1xf32>
    %11 = arith.mulf %8, %9 : vector<8x256xf32>
    %cst_6 = arith.constant dense<0.000000e+00> : vector<8xf32>
    %12 = vector.multi_reduction <add>, %11, %cst_6 [1] : vector<8x256xf32> to vector<8xf32>
    %13 = vector.shape_cast %12 : vector<8xf32> to vector<8x1xf32>
    %14 = arith.addf %10, %13 : vector<8x1xf32>
    %c0_7 = arith.constant 0 : index
    %c0_8 = arith.constant 0 : index
    %15 = vector.load %arg5[%c0_7, %c0_8] : memref<8x1xf32, #tpu.memory_space<vmem>>, vector<8x1xf32>
    tpu.vector_store %arg5[%c0_7, %c0_8], %14 {strides = array<i32>} : memref<8x1xf32, #tpu.memory_space<vmem>>, vector<8x1xf32>,
    %c0_9 = arith.constant 0 : index
    %c0_10 = arith.constant 0 : index
    %16 = vector.load %arg6[%c0_9, %c0_10] : memref<8x1xf32, #tpu.memory_space<vmem>>, vector<8x1xf32>
    %17 = arith.addf %8, %9 : vector<8x256xf32>
    %cst_11 = arith.constant dense<0.000000e+00> : vector<8xf32>
    %18 = vector.multi_reduction <add>, %17, %cst_11 [1] : vector<8x256xf32> to vector<8xf32>
    %19 = vector.shape_cast %18 : vector<8xf32> to vector<8x1xf32>
    %20 = arith.addf %16, %19 : vector<8x1xf32>
    %c0_12 = arith.constant 0 : index
    %c0_13 = arith.constant 0 : index
    %21 = vector.load %arg6[%c0_12, %c0_13] : memref<8x1xf32, #tpu.memory_space<vmem>>, vector<8x1xf32>
    tpu.vector_store %arg6[%c0_12, %c0_13], %20 {strides = array<i32>} : memref<8x1xf32, #tpu.memory_space<vmem>>, vector<8x1xf32>,
    %c0_i32_14 = arith.constant 0 : i32
    %22 = arith.cmpi eq, %arg1, %c0_i32_14 : i32
    %23 = arith.extui %22 : i1 to i32
    %c0_i32_15 = arith.constant 0 : i32
    %24 = arith.cmpi ne, %23, %c0_i32_15 : i32
    scf.if %24 {
      %c0_16 = arith.constant 0 : index
      %c0_17 = arith.constant 0 : index
      %25 = vector.load %arg5[%c0_16, %c0_17] : memref<8x1xf32, #tpu.memory_space<vmem>>, vector<8x1xf32>
      %cst_18 = arith.constant 2.000000e+00 : f32
      %26 = vector.broadcast %cst_18 : f32 to vector<8x1xf32>
      %27 = arith.mulf %26, %25 : vector<8x1xf32>
      %cst_19 = arith.constant 1.000000e-07 : f32
      %28 = vector.broadcast %cst_19 : f32 to vector<8x1xf32>
      %29 = arith.addf %27, %28 : vector<8x1xf32>
      %c0_20 = arith.constant 0 : index
      %c0_21 = arith.constant 0 : index
      %30 = vector.load %arg6[%c0_20, %c0_21] : memref<8x1xf32, #tpu.memory_space<vmem>>, vector<8x1xf32>
      %cst_22 = arith.constant 1.000000e-07 : f32
      %31 = vector.broadcast %cst_22 : f32 to vector<8x1xf32>
      %32 = arith.addf %30, %31 : vector<8x1xf32>
      %33 = arith.divf %29, %32 : vector<8x1xf32>
      %cst_23 = arith.constant 1.000000e+00 : f32
      %34 = vector.broadcast %cst_23 : f32 to vector<8x1xf32>
      %35 = arith.subf %34, %33 : vector<8x1xf32>
      %36 = vector.shape_cast %35 : vector<8x1xf32> to vector<8x1xf32>
      %37 = vector.broadcast %36 : vector<8x1xf32> to vector<8x128xf32>
      %c0_24 = arith.constant 0 : index
      %c0_25 = arith.constant 0 : index
      %38 = vector.load %arg4[%c0_24, %c0_25] : memref<8x128xf32, #tpu.memory_space<vmem>>, vector<8x128xf32>
      tpu.vector_store %arg4[%c0_24, %c0_25], %37 {strides = array<i32>} : memref<8x128xf32, #tpu.memory_space<vmem>>, vector<8x128xf32>,
    } else {
    }
    return
  }
  func.func @transform_0(%arg0: i32, %arg1: i32) -> (i32, i32) {
    %c0_i32 = arith.constant 0 : i32
    return %arg0, %arg1 : i32, i32
  }
  func.func @transform_1(%arg0: i32, %arg1: i32) -> (i32, i32) {
    %c0_i32 = arith.constant 0 : i32
    return %arg0, %arg1 : i32, i32
  }
  func.func @transform_2(%arg0: i32, %arg1: i32) -> (i32, i32) {
    %c0_i32 = arith.constant 0 : i32
    %c0_i32_0 = arith.constant 0 : i32
    return %arg0, %c0_i32 : i32, i32
  }
}

</mosaic_0001>

<llo_original>
// kernel: tpu_custom_call.1
$region0: #{tpu_custom_call.1}
  #allocation0 [shape = 'u32[]', space=smem, size = 0x4, offset = 0x4, fixed_abs, tag = 'smem constant byte address 0x4 - core index']
  #allocation1 [shape = 'u32[72,128]{1,0:T(1,128)}', space=vmem, size = 0x9000, scoped, tag = 'internal scratch']
  #allocation2 [shape = 'f32[8,1]{1,0:T(8,128)}', space=vmem, size = 0x1000, scoped, tag = 'scratch operand']
  #allocation3 [shape = 'f32[8,1]{1,0:T(8,128)}', space=vmem, size = 0x1000, scoped, tag = 'scratch operand']
  %s0 = inlined_call_operand.hbm [shape: f32[8,256], index: 0, kind: input, shape index: {}]
  %s1 = inlined_call_operand.hbm [shape: f32[8,256], index: 1, kind: input, shape index: {}]
  %s2 = inlined_call_operand.hbm [shape: f32[8,128], index: 2, kind: output, shape index: {}]
  %s3 = sld [smem:[#allocation0]]
  $region34: #{tpu_custom_call.1} parent=0
    _
  %s5 = ssub.s32 1, %s3
  %s6 = scalar_select 0, %s5, %s3
  $region1: #{tpu_custom_call.1} parent=0
    #allocation4 [shape = 'u8[8192]{0}', space=vmem, size = 0x2000, scoped, tag = 'input window, operand 0, single buffered']
    #allocation5 [shape = 's32[1]{0}', space=sflag, size = 0x4, scoped, tag = 'scoped memory for tpu_custom_call.1']
    #allocation6 [shape = 's32[1]{0}', space=sflag, size = 0x4, scoped, tag = 'scoped memory for tpu_custom_call.1']
    #allocation7 [shape = 'u8[8192]{0}', space=vmem, size = 0x2000, scoped, tag = 'input window, operand 1, single buffered']
    #allocation8 [shape = 's32[1]{0}', space=sflag, size = 0x4, scoped, tag = 'scoped memory for tpu_custom_call.1']
    #allocation9 [shape = 'u8[4096]{0}', space=vmem, size = 0x1000, scoped, tag = 'output window, operand 0, single buffered']
    %7 = vsyncpa [#allocation5], 0
    %8 = vsyncpa [#allocation8], 0
    %9 = vsyncpa [#allocation6], 0
    // Predicated region
    $region2: #{tpu_custom_call.1} parent=1 // pred_check
      _
    $region3: #{tpu_custom_call.1} parent=1 // pred_check_branch
      %11 = sbr.rel (0) target = $region5
    $region4: #{tpu_custom_call.1} parent=1 // pred_region
      %13 = vsyncadd [#allocation5], 0
      %s15 = sshll.u32 %s0, 4
      %s16 = int_to_ptr.hbm [resolvable:$true] %s15
      %s17 = sshll.u32 [#allocation4], 4
      %s18 = int_to_ptr.vmem [resolvable:$true] %s17
      %20 = dma.hbm_to_vmem [thread:$0]  %s16, 256, %s18, [#allocation5]
    $region5: #{tpu_custom_call.1} parent=1 // pred_fallthru
      _
    // Predicated region
    $region6: #{tpu_custom_call.1} parent=1 // pred_check
      _
    $region7: #{tpu_custom_call.1} parent=1 // pred_check_branch
      %22 = sbr.rel (0) target = $region9
    $region8: #{tpu_custom_call.1} parent=1 // pred_region
      %24 = vsyncadd [#allocation8], 0
      %s26 = sshll.u32 %s1, 4
      %s27 = int_to_ptr.hbm [resolvable:$true] %s26
      %s28 = sshll.u32 [#allocation7], 4
      %s29 = int_to_ptr.vmem [resolvable:$true] %s28
      %31 = dma.hbm_to_vmem [thread:$0]  %s27, 256, %s29, [#allocation8]
    $region9: #{tpu_custom_call.1} parent=1 // pred_fallthru
      _
    // Predicated region
    $region10: #{tpu_custom_call.1} parent=1 // pred_check
      _
    $region11: #{tpu_custom_call.1} parent=1 // pred_check_branch
      %33 = sbr.rel (0) target = $region13
    $region12: #{tpu_custom_call.1} parent=1 // pred_region
      %35 = dma.done [#allocation5], 256
    $region13: #{tpu_custom_call.1} parent=1 // pred_fallthru
      _
    // Predicated region
    $region14: #{tpu_custom_call.1} parent=1 // pred_check
      _
    $region15: #{tpu_custom_call.1} parent=1 // pred_check_branch
      %37 = sbr.rel (0) target = $region17
    $region16: #{tpu_custom_call.1} parent=1 // pred_region
      %39 = dma.done [#allocation8], 256
    $region17: #{tpu_custom_call.1} parent=1 // pred_fallthru
      _
    %p40 = scmp.eq.s32.totalorder 0, 0
    // Predicated region
    $region18: #{tpu_custom_call.1} parent=1 // pred_check
      %p41 = pneg %p40
    $region19: #{tpu_custom_call.1} parent=1 // pred_check_branch
      %43 = sbr.rel (%p41) target = $region21
    $region20: #{tpu_custom_call.1} parent=1 // pred_region
      %vm44 = vcmask 7168
      %45 = vst.msk [vmem:[#allocation2] sm:$0xff] %vm44, 0.0
      %46 = vst.msk [vmem:[#allocation3] sm:$0xff] %vm44, 0.0
    $region21: #{tpu_custom_call.1} parent=1 // pred_fallthru
      _
    %v47 = vld [vmem:[#allocation4] sm:$0xff]
    %v48 = vld [vmem:[#allocation4 + $0x8] sm:$0xff]
    %v49 = vxor.u32 %v47, 2147483648
    %v50 = vxor.u32 %v48, 2147483648
    %v51 = vmul.f32 %v49, 1.442695
    %v52 = vpow.pop %v51
    %v53 = vmul.f32 %v50, 1.442695
    %v54 = vpow.pop %v53
    %v55 = vadd.f32 %v52, 1.0
    %v56 = vadd.f32 %v54, 1.0
    %v57 = vrcp.pop %v55
    %v58 = vmul.f32 %v55, %v57
    %v59 = vsub.f32 1.0, %v58
    %v60 = vmul.f32 %v57, %v59
    %v61 = vadd.f32 %v57, %v60
    %vm62 = vweird.f32 %v55
    %vm63 = vweird.f32 %v57
    %vm64 = vmor %vm62, %vm63
    %v65 = vsel %vm64, %v57, %v61
    %v66 = vand.u32 2147483647, %v55
    %vm67 = vcmp.eq.f32.partialorder %v66, 8.507059e+37
    %v68 = vand.u32 %v55, 2147483648
    %v69 = vor.u32 1.1754944e-38, %v68
    %v70 = vsel %vm67, %v69, %v65
    %v71 = vmul.f32 1.0, %v70
    %v72 = vrcp.pop %v56
    %v73 = vmul.f32 %v56, %v72
    %v74 = vsub.f32 1.0, %v73
    %v75 = vmul.f32 %v72, %v74
    %v76 = vadd.f32 %v72, %v75
    %vm77 = vweird.f32 %v56
    %vm78 = vweird.f32 %v72
    %vm79 = vmor %vm77, %vm78
    %v80 = vsel %vm79, %v72, %v76
    %v81 = vand.u32 2147483647, %v56
    %vm82 = vcmp.eq.f32.partialorder %v81, 8.507059e+37
    %v83 = vand.u32 %v56, 2147483648
    %v84 = vor.u32 1.1754944e-38, %v83
    %v85 = vsel %vm82, %v84, %v80
    %v86 = vmul.f32 1.0, %v85
    %v87 = vld [vmem:[#allocation7] sm:$0xff]
    %v88 = vld [vmem:[#allocation7 + $0x8] sm:$0xff]
    %v89 = vld [vmem:[#allocation2] sm:$0xff]
    %v90 = vmul.f32 %v71, %v87
    %v91 = vmul.f32 %v86, %v88
    %v92 = vadd.f32 %v90, %v91
    %93 = vadd.xlane.f32.xlu0 %v92
    %v94 = vpop.xlane.xlu0 %93
    %v95 = vadd.f32 %v89, %v94
    %vm96 = vcmask 7168
    %97 = vst.msk [vmem:[#allocation2] sm:$0xff] %vm96, %v95
    %v98 = vld [vmem:[#allocation3] sm:$0xff]
    %v99 = vadd.f32 %v71, %v87
    %v100 = vadd.f32 %v86, %v88
    %v101 = vadd.f32 %v99, %v100
    %102 = vadd.xlane.f32.xlu0 %v101
    %v103 = vpop.xlane.xlu0 %102
    %v104 = vadd.f32 %v98, %v103
    %105 = vst.msk [vmem:[#allocation3] sm:$0xff] %vm96, %v104
    // Predicated region
    $region22: #{tpu_custom_call.1} parent=1 // pred_check
      %p106 = pneg %p40
    $region23: #{tpu_custom_call.1} parent=1 // pred_check_branch
      %108 = sbr.rel (%p106) target = $region25
    $region24: #{tpu_custom_call.1} parent=1 // pred_region
      %v109 = vld [vmem:[#allocation2] sm:$0xff]
      %v110 = vmul.f32 %v109, 2.0
      %v111 = vadd.f32 %v110, 1e-07
      %v112 = vld [vmem:[#allocation3] sm:$0xff]
      %v113 = vadd.f32 %v112, 1e-07
      %v114 = vrcp.pop %v113
      %v115 = vmul.f32 %v113, %v114
      %v116 = vsub.f32 1.0, %v115
      %v117 = vmul.f32 %v114, %v116
      %v118 = vadd.f32 %v114, %v117
      %vm119 = vweird.f32 %v113
      %vm120 = vweird.f32 %v114
      %vm121 = vmor %vm119, %vm120
      %v122 = vsel %vm121, %v114, %v118
      %v123 = vand.u32 2147483647, %v113
      %vm124 = vcmp.eq.f32.partialorder %v123, 8.507059e+37
      %v125 = vand.u32 %v113, 2147483648
      %v126 = vor.u32 1.1754944e-38, %v125
      %v127 = vsel %vm124, %v126, %v122
      %v128 = vmul.f32 %v111, %v127
      %v129 = vsub.f32 1.0, %v128
      %131 = vset.pattern.permute.xlu0 0
      %132 = vperm.xlu0 %131, %v129
      %v133 = vpop.permute.xlu0 %132
      %135 = vst [vmem:[#allocation9] sm:$0xff] %v133
    $region25: #{tpu_custom_call.1} parent=1 // pred_fallthru
      _
    // Predicated region
    $region26: #{tpu_custom_call.1} parent=1 // pred_check
      _
    $region27: #{tpu_custom_call.1} parent=1 // pred_check_branch
      %137 = sbr.rel (0) target = $region29
    $region28: #{tpu_custom_call.1} parent=1 // pred_region
      %139 = vsyncadd [#allocation6], 0
      %s141 = sshll.u32 [#allocation9], 4
      %s142 = int_to_ptr.vmem [resolvable:$true] %s141
      %s143 = sshll.u32 %s2, 4
      %s144 = int_to_ptr.hbm [resolvable:$true] %s143
      %146 = dma.vmem_to_hbm [thread:$0]  %s142, 128, %s144, [#allocation6]
    $region29: #{tpu_custom_call.1} parent=1 // pred_fallthru
      _
    // Predicated region
    $region30: #{tpu_custom_call.1} parent=1 // pred_check
      _
    $region31: #{tpu_custom_call.1} parent=1 // pred_check_branch
      %148 = sbr.rel (0) target = $region33
    $region32: #{tpu_custom_call.1} parent=1 // pred_region
      %150 = dma.done [#allocation6], 128
    $region33: #{tpu_custom_call.1} parent=1 // pred_fallthru
      _
    %151 = vsyncpa [#allocation5], 1
    %152 = vsyncpa [#allocation8], 1
    %153 = vsyncpa [#allocation6], 1

</llo_original>
